<compile_context>
chip_gen: v5e
topology: v5e:2x2
jax: 0.10.0
libtpu: 0.0.40
codegen_flags: <defaults>
</compile_context>

<pallas_src>
import functools

import numpy as np
import jax
import jax.numpy as jnp
from jax import lax
from jax.experimental import pallas as pl
from jax.experimental.pallas import tpu as pltpu

EPS = 1e-5


def _layernorm_kernel(x_ref, g_ref, b_ref, o_ref, *, chunk, eps):
    """Normalize one [tm, C] block in `chunk`-row strips (bounds vreg live ranges)."""
    tm = x_ref.shape[0]
    g = g_ref[...].astype(jnp.float32)          # [1, C] resident gamma
    b = b_ref[...].astype(jnp.float32)          # [1, C] resident beta

    def norm(x):
        xf = x.astype(jnp.float32)              # stats always in f32
        mu = jnp.mean(xf, axis=-1, keepdims=True)
        xc = xf - mu
        var = jnp.mean(xc * xc, axis=-1, keepdims=True)   # biased var, like F.layer_norm
        inv = lax.rsqrt(var + eps)                         # EUP rsqrt
        return ((xc * inv) * g + b).astype(o_ref.dtype)

    n_full = tm // chunk                        # static

    def body(j, carry):
        r0 = pl.multiple_of(j * chunk, chunk)
        o_ref[pl.ds(r0, chunk), :] = norm(x_ref[pl.ds(r0, chunk), :])
        return carry

    lax.fori_loop(0, n_full, body, 0)

    rem = tm - n_full * chunk                   # static tail (single ragged block only)
    if rem > 0:
        r0 = n_full * chunk
        o_ref[r0:, :] = norm(x_ref[r0:, :])


def _pick_row_tile(R, C, in_itemsize, out_itemsize,
                   vmem_budget=12 << 20, max_rows=4096, chunk_rows=256):
    """Pick (block_rows, chunk_rows) for the row axis.

    Working set is 2x double-buffered input tile + 2x output tile; the ~12 MiB
    budget leaves headroom on every generation (v5e 16 MiB default scope,
    v6e 32 MiB, v7x 32 MiB default / 64 MiB physical).
    """
    sub = max(8, 32 // min(in_itemsize, out_itemsize))   # 8 f32 / 16 bf16 / 32 int8
    per_row = 2 * C * (in_itemsize + out_itemsize)
    tm = max(sub, min(vmem_budget // per_row, max_rows))
    if R >= 2 * sub:
        # Keep >= 2 row blocks so "parallel" can split the grid across v7x's 2 TCs.
        half = -(-R // 2)
        tm = min(tm, -(-half // sub) * sub)
    if tm >= R:
        # One block spanning every row; block dim == array dim is legal for any R.
        return R, min(chunk_rows, R)
    chunk = max(sub, (min(chunk_rows, tm) // sub) * sub)
    tm = max(chunk, (tm // chunk) * chunk)               # whole number of chunks/block
    return tm, chunk


def layer_norm(x, weight, bias, *, eps=EPS):
    """LayerNorm over the last axis of x, matching torch.nn.functional.layer_norm."""
    orig_shape = x.shape
    C = orig_shape[-1]
    x2 = x.reshape(-1, C)                       # native dtype, no wrapper upcast
    R = x2.shape[0]

    g = weight.reshape(1, C)
    b = bias.reshape(1, C)

    in_bytes = jnp.dtype(x2.dtype).itemsize
    tm, chunk = _pick_row_tile(R, C, in_bytes, in_bytes)
    num_blocks = pl.cdiv(R, tm)                 # ragged last block is masked by Pallas

    out = pl.pallas_call(
        functools.partial(_layernorm_kernel, chunk=chunk, eps=eps),
        out_shape=jax.ShapeDtypeStruct((R, C), x2.dtype),
        grid=(num_blocks,),
        in_specs=[
            pl.BlockSpec((tm, C), lambda i: (i, 0)),   # x tile
            pl.BlockSpec((1, C), lambda i: (0, 0)),    # gamma (resident, no re-DMA)
            pl.BlockSpec((1, C), lambda i: (0, 0)),    # beta  (resident)
        ],
        out_specs=pl.BlockSpec((tm, C), lambda i: (i, 0)),
        compiler_params=pltpu.CompilerParams(
            dimension_semantics=("parallel",),         # rows independent -> megacore
            vmem_limit_bytes=32 << 20,                 # safe on v5e/v6e/v7x
        ),
    )(x2, g, b)

    return out.reshape(orig_shape)


def _reference(x, weight, bias, eps=EPS):
    """Pure-JAX reference mirroring torch.nn.functional.layer_norm."""
    x32 = x.astype(jnp.float32)
    mu = x32.mean(axis=-1, keepdims=True)
    var = ((x32 - mu) ** 2).mean(axis=-1, keepdims=True)
    out = ((x32 - mu) / jnp.sqrt(var + eps)) * weight.astype(jnp.float32) + bias.astype(jnp.float32)
    return out.astype(x.dtype)


if __name__ == "__main__":
    key = jax.random.PRNGKey(0)
    k1, k2, k3, k4 = jax.random.split(key, 4)

    # Shapes consistent with the module's use in PiFold: [batch, seq, c_in]
    B, L, C = 2, 64, 128
    x = jax.random.normal(k1, (B, L, C), jnp.float32)
    # module init is weight=ones, bias=zeros; perturb so the affine path is exercised
    weight = 1.0 + 0.1 * jax.random.normal(k2, (C,), jnp.float32)
    bias = 0.1 * jax.random.normal(k3, (C,), jnp.float32)

    out = jax.block_until_ready(layer_norm(x, weight, bias))
    np.testing.assert_allclose(np.asarray(out), np.asarray(_reference(x, weight, bias)),
                               rtol=1e-5, atol=1e-5)

    # Second case: row count not a multiple of the block -> exercises the masked
    # ragged last grid block (no wrapper padding).
    x2 = jax.random.normal(k4, (2, 33, C), jnp.float32)
    out2 = jax.block_until_ready(layer_norm(x2, weight, bias))
    np.testing.assert_allclose(np.asarray(out2), np.asarray(_reference(x2, weight, bias)),
                               rtol=1e-5, atol=1e-5)

    print("KERNEL_OK")
</pallas_src>

<mosaic_0001>
module attributes {stable_mosaic.version = 11 : i64} {
  func.func @_layernorm_kernel(%arg0: i32, %arg1: memref<64x128xf32, #tpu.memory_space<vmem>>, %arg2: memref<1x128xf32, #tpu.memory_space<vmem>>, %arg3: memref<1x128xf32, #tpu.memory_space<vmem>>, %arg4: memref<64x128xf32, #tpu.memory_space<vmem>>) attributes {dimension_semantics = [#tpu.dimension_semantics<parallel>], iteration_bounds = array<i64: 2>, scalar_prefetch = 0 : i64, scratch_operands = 0 : i64, tpu.core_type = #tpu.core_type<tc>, window_params = [{transform_indices = @transform_0, window_bounds = array<i64: 64, 128>}, {pipeline_mode = #tpu.pipeline_mode<synchronous>, transform_indices = @transform_1, window_bounds = array<i64: 1, 128>}, {pipeline_mode = #tpu.pipeline_mode<synchronous>, transform_indices = @transform_2, window_bounds = array<i64: 1, 128>}, {transform_indices = @transform_3, window_bounds = array<i64: 64, 128>}]} {
    %c0 = arith.constant 0 : index
    %c0_0 = arith.constant 0 : index
    %0 = vector.load %arg2[%c0, %c0_0] : memref<1x128xf32, #tpu.memory_space<vmem>>, vector<1x128xf32>
    %c0_1 = arith.constant 0 : index
    %c0_2 = arith.constant 0 : index
    %1 = vector.load %arg3[%c0_1, %c0_2] : memref<1x128xf32, #tpu.memory_space<vmem>>, vector<1x128xf32>
    %c0_i32 = arith.constant 0 : i32
    %c64_i32 = arith.constant 64 : i32
    %2 = arith.muli %c0_i32, %c64_i32 : i32
    %3 = tpu.assume_multiple %2, 64 : i32
    %4 = arith.index_cast %3 : i32 to index
    %c0_3 = arith.constant 0 : index
    %5 = vector.load %arg1[%4, %c0_3] : memref<64x128xf32, #tpu.memory_space<vmem>>, vector<64x128xf32>
    %cst = arith.constant dense<0.000000e+00> : vector<64xf32>
    %6 = vector.multi_reduction <add>, %5, %cst [1] : vector<64x128xf32> to vector<64xf32>
    %7 = vector.shape_cast %6 : vector<64xf32> to vector<64x1xf32>
    %cst_4 = arith.constant 1.280000e+02 : f32
    %8 = vector.broadcast %cst_4 : f32 to vector<64x1xf32>
    %9 = arith.divf %7, %8 : vector<64x1xf32>
    %10 = vector.broadcast %9 : vector<64x1xf32> to vector<64x128xf32>
    %11 = arith.subf %5, %10 : vector<64x128xf32>
    %12 = arith.mulf %11, %11 : vector<64x128xf32>
    %cst_5 = arith.constant dense<0.000000e+00> : vector<64xf32>
    %13 = vector.multi_reduction <add>, %12, %cst_5 [1] : vector<64x128xf32> to vector<64xf32>
    %14 = vector.shape_cast %13 : vector<64xf32> to vector<64x1xf32>
    %cst_6 = arith.constant 1.280000e+02 : f32
    %15 = vector.broadcast %cst_6 : f32 to vector<64x1xf32>
    %16 = arith.divf %14, %15 : vector<64x1xf32>
    %cst_7 = arith.constant 9.99999974E-6 : f32
    %17 = vector.broadcast %cst_7 : f32 to vector<64x1xf32>
    %18 = arith.addf %16, %17 : vector<64x1xf32>
    %19 = math.rsqrt %18 : vector<64x1xf32>
    %20 = vector.broadcast %19 : vector<64x1xf32> to vector<64x128xf32>
    %21 = arith.mulf %11, %20 : vector<64x128xf32>
    %22 = vector.broadcast %0 : vector<1x128xf32> to vector<64x128xf32>
    %23 = arith.mulf %21, %22 : vector<64x128xf32>
    %24 = vector.broadcast %1 : vector<1x128xf32> to vector<64x128xf32>
    %25 = arith.addf %23, %24 : vector<64x128xf32>
    %26 = arith.index_cast %3 : i32 to index
    %c0_8 = arith.constant 0 : index
    %27 = vector.load %arg4[%26, %c0_8] : memref<64x128xf32, #tpu.memory_space<vmem>>, vector<64x128xf32>
    tpu.vector_store %arg4[%26, %c0_8], %25 {strides = array<i32>} : memref<64x128xf32, #tpu.memory_space<vmem>>, vector<64x128xf32>,
    %c1_i32 = arith.constant 1 : i32
    return
  }
  func.func @transform_0(%arg0: i32) -> (i32, i32) {
    %c0_i32 = arith.constant 0 : i32
    %c0_i32_0 = arith.constant 0 : i32
    return %arg0, %c0_i32 : i32, i32
  }
  func.func @transform_1(%arg0: i32) -> (i32, i32) {
    %c0_i32 = arith.constant 0 : i32
    %c0_i32_0 = arith.constant 0 : i32
    %c0_i32_1 = arith.constant 0 : i32
    return %c0_i32, %c0_i32_0 : i32, i32
  }
  func.func @transform_2(%arg0: i32) -> (i32, i32) {
    %c0_i32 = arith.constant 0 : i32
    %c0_i32_0 = arith.constant 0 : i32
    %c0_i32_1 = arith.constant 0 : i32
    return %c0_i32, %c0_i32_0 : i32, i32
  }
  func.func @transform_3(%arg0: i32) -> (i32, i32) {
    %c0_i32 = arith.constant 0 : i32
    %c0_i32_0 = arith.constant 0 : i32
    return %arg0, %c0_i32 : i32, i32
  }
}

</mosaic_0001>

<llo_original>
// kernel: tpu_custom_call.1
$region0: #{tpu_custom_call.1}
  #allocation0 [shape = 'u32[]', space=smem, size = 0x4, offset = 0x4, fixed_abs, tag = 'smem constant byte address 0x4 - core index']
  #allocation1 [shape = 'u32[72,128]{1,0:T(1,128)}', space=vmem, size = 0x9000, scoped, tag = 'internal scratch']
  %s0 = inlined_call_operand.hbm [shape: f32[128,128], index: 0, kind: input, shape index: {}]
  %s1 = inlined_call_operand.hbm [shape: f32[1,128], index: 1, kind: input, shape index: {}]
  %s2 = inlined_call_operand.vmem [shape: f32[1,128], index: 2, kind: input, shape index: {}]
  %s3 = inlined_call_operand.hbm [shape: f32[128,128], index: 3, kind: output, shape index: {}]
  %s4 = sld [smem:[#allocation0]]
  $region53: #{tpu_custom_call.1} parent=0
    _
  %s6 = ssub.s32 1, %s4
  %s7 = scalar_select 0, %s6, %s4
  $region1: #{tpu_custom_call.1} parent=0
    #allocation2 [shape = 'u8[65536]{0}', space=vmem, size = 0x10000, scoped, tag = 'input window, operand 0']
    #allocation3 [shape = 's32[2]{0}', space=sflag, size = 0x8, scoped, tag = 'scoped memory for tpu_custom_call.1']
    #allocation4 [shape = 's32[2]{0}', space=sflag, size = 0x8, scoped, tag = 'scoped memory for tpu_custom_call.1']
    #allocation5 [shape = 'u8[512]{0}', space=vmem, size = 0x400, scoped, tag = 'input window, operand 1, single buffered']
    #allocation6 [shape = 's32[1]{0}', space=sflag, size = 0x4, scoped, tag = 'scoped memory for tpu_custom_call.1']
    #allocation7 [shape = 'u8[65536]{0}', space=vmem, size = 0x10000, scoped, tag = 'output window, operand 0']
    %8 = vsyncpa [#allocation3], 0
    %s9 = scalar_lea.sflag [#allocation3], 1
    %10 = vsyncpa %s9, 0
    %11 = vsyncpa [#allocation6], 0
    %12 = vsyncpa [#allocation4], 0
    %s13 = scalar_lea.sflag [#allocation4], 1
    %14 = vsyncpa %s13, 0
    loop: start=0, step=1, limit=4
    $region2: #{tpu_custom_call.1} parent=1 // loop_pre_header
      _
    $region3: #{tpu_custom_call.1} parent=1 // loop_header
      %s16 = sphi 0, %s20
      %p17 = scmp.ge.s32.totalorder %s16, 4
      %s26 = sphi 0, %s28
      %s29 = sphi 0, %s26
      %s30 = sphi 0, %s29
      %s46 = sphi 0, %s30
      %s50 = sphi 0, %s50
      %s52 = sphi 0, %s50
      %s53 = sphi 0, %s52
      %s67 = sphi 0, %s53
      %s71 = sphi 0, %s71
      %s73 = sphi 0, %s71
      %s74 = sphi 0, %s73
      %s88 = sphi 0, %s74
      %s94 = sphi 0, %s96
      %s97 = sphi 0, %s94
      %s98 = sphi 0, %s97
      %s114 = sphi 0, %s98
    $region4: #{tpu_custom_call.1} parent=1 // loop_header_branch
      %19 = sbr.rel (%p17) target = $region8
    $region5: #{tpu_custom_call.1} parent=1 // loop_body
      %s21 = ssub.s32 %s16, 1
      %s22 = ssub.s32 %s16, 2
      %s23 = sadd.s32 %s16, 1
      %s24 = ssub.s32 %s16, %s23
      %p25 = scmp.eq.s32.totalorder %s24, 0
      %s27 = sadd.s32 %s26, 1
      %s28 = scalar_select %p25, %s26, %s27
      %p31 = pneg %p25
      %p32 = scmp.eq.s32.totalorder %s16, 1
      %p33 = por %p31, %p32
      %p34 = scmp.ne.s32.totalorder %s26, %s29
      %p35 = scmp.eq.s32.totalorder %s16, 0
      %p36 = por %p34, %p35
      %p37 = scmp.ne.s32.totalorder %s26, %s29
      %p38 = scmp.eq.s32.totalorder %s21, 1
      %p39 = por %p37, %p38
      %p40 = scmp.ne.s32.totalorder %s29, %s30
      %p41 = scmp.eq.s32.totalorder %s21, 0
      %p42 = por %p40, %p41
      %p43 = scmp.ne.s32.totalorder %s29, %s30
      %p44 = scmp.eq.s32.totalorder %s22, 1
      %p45 = por %p43, %p44
      %p47 = scmp.ne.s32.totalorder %s30, %s46
      %p48 = scmp.eq.s32.totalorder %s22, 0
      %p49 = por %p47, %p48
      %s51 = sadd.s32 %s50, 1
      %p54 = scmp.eq.s32.totalorder %s16, 1
      %p55 = scmp.ne.s32.totalorder %s50, %s52
      %p56 = scmp.eq.s32.totalorder %s16, 0
      %p57 = por %p55, %p56
      %p58 = scmp.ne.s32.totalorder %s50, %s52
      %p59 = scmp.eq.s32.totalorder %s21, 1
      %p60 = por %p58, %p59
      %p61 = scmp.ne.s32.totalorder %s52, %s53
      %p62 = scmp.eq.s32.totalorder %s21, 0
      %p63 = por %p61, %p62
      %p64 = scmp.ne.s32.totalorder %s52, %s53
      %p65 = scmp.eq.s32.totalorder %s22, 1
      %p66 = por %p64, %p65
      %p68 = scmp.ne.s32.totalorder %s53, %s67
      %p69 = scmp.eq.s32.totalorder %s22, 0
      %p70 = por %p68, %p69
      %s72 = sadd.s32 %s71, 1
      %p75 = scmp.eq.s32.totalorder %s16, 1
      %p76 = scmp.ne.s32.totalorder %s71, %s73
      %p77 = scmp.eq.s32.totalorder %s16, 0
      %p78 = por %p76, %p77
      %p79 = scmp.ne.s32.totalorder %s71, %s73
      %p80 = scmp.eq.s32.totalorder %s21, 1
      %p81 = por %p79, %p80
      %p82 = scmp.ne.s32.totalorder %s73, %s74
      %p83 = scmp.eq.s32.totalorder %s21, 0
      %p84 = por %p82, %p83
      %p85 = scmp.ne.s32.totalorder %s73, %s74
      %p86 = scmp.eq.s32.totalorder %s22, 1
      %p87 = por %p85, %p86
      %p89 = scmp.ne.s32.totalorder %s74, %s88
      %p90 = scmp.eq.s32.totalorder %s22, 0
      %p91 = por %p89, %p90
      %s92 = ssub.s32 %s16, %s23
      %p93 = scmp.eq.s32.totalorder %s92, 0
      %s95 = sadd.s32 %s94, 1
      %s96 = scalar_select %p93, %s94, %s95
      %p99 = pneg %p93
      %p100 = scmp.eq.s32.totalorder %s16, 1
      %p101 = por %p99, %p100
      %p102 = scmp.ne.s32.totalorder %s94, %s97
      %p103 = scmp.eq.s32.totalorder %s16, 0
      %p104 = por %p102, %p103
      %p105 = scmp.ne.s32.totalorder %s94, %s97
      %p106 = scmp.eq.s32.totalorder %s21, 1
      %p107 = por %p105, %p106
      %p108 = scmp.ne.s32.totalorder %s97, %s98
      %p109 = scmp.eq.s32.totalorder %s21, 0
      %p110 = por %p108, %p109
      %p111 = scmp.ne.s32.totalorder %s97, %s98
      %p112 = scmp.eq.s32.totalorder %s22, 1
      %p113 = por %p111, %p112
      %p115 = scmp.ne.s32.totalorder %s98, %s114
      %p116 = scmp.eq.s32.totalorder %s22, 0
      %p117 = por %p115, %p116
      %p118 = scmp.le.s32.totalorder 1, %s16
      %p119 = scmp.lt.s32.totalorder %s16, 3
      %p120 = pnand %p118, %p119
      %p121 = pneg %p120
      // Predicated region
      $region9: #{tpu_custom_call.1} parent=5 // pred_check
        _
      $region10: #{tpu_custom_call.1} parent=5 // pred_check_branch
        %123 = sbr.rel (%p120) target = $region12
      $region11: #{tpu_custom_call.1} parent=5 // pred_region
        %s124 = ssub.s32 %s16, 1
        // Predicated region
        $region13: #{tpu_custom_call.1} parent=11 // pred_check
          %p125 = pneg %p63
        $region14: #{tpu_custom_call.1} parent=11 // pred_check_branch
          %127 = sbr.rel (%p125) target = $region16
        $region15: #{tpu_custom_call.1} parent=11 // pred_region
          %129 = vsyncadd [#allocation6], 0
          %s131 = sshll.u32 %s1, 4
          %s132 = int_to_ptr.hbm [resolvable:$true] %s131
          %s133 = sshll.u32 [#allocation5], 4
          %s134 = int_to_ptr.vmem [resolvable:$true] %s133
          %136 = dma.hbm_to_vmem [thread:$0]  %s132, 16, %s134, [#allocation6]
        $region16: #{tpu_custom_call.1} parent=11 // pred_fallthru
          _
        // Predicated region
        $region17: #{tpu_custom_call.1} parent=11 // pred_check
          %p137 = pneg %p84
        $region18: #{tpu_custom_call.1} parent=11 // pred_check_branch
          %139 = sbr.rel (%p137) target = $region20
        $region19: #{tpu_custom_call.1} parent=11 // pred_region
          _
        $region20: #{tpu_custom_call.1} parent=11 // pred_fallthru
          _
      $region12: #{tpu_custom_call.1} parent=5 // pred_fallthru
        _
      %p140 = scmp.lt.s32.totalorder %s16, 2
      // Predicated region
      $region21: #{tpu_custom_call.1} parent=5 // pred_check
        %p141 = pneg %p140
      $region22: #{tpu_custom_call.1} parent=5 // pred_check_branch
        %143 = sbr.rel (%p141) target = $region24
      $region23: #{tpu_custom_call.1} parent=5 // pred_region
        // Predicated region
        $region25: #{tpu_custom_call.1} parent=23 // pred_check
          %p144 = pneg %p36
        $region26: #{tpu_custom_call.1} parent=23 // pred_check_branch
          %146 = sbr.rel (%p144) target = $region28
        $region27: #{tpu_custom_call.1} parent=23 // pred_region
          %s147 = sand.u32 %s26, 1
          %s148 = scalar_lea.sflag [#allocation3], %s147
          %s149 = sand.u32 %s26, 1
          %s150 = smul.addr %s149, 64
          %s151 = scalar_lea.vmem [#allocation2], %s150
          %s152 = smul.u32 8, %s16
          %154 = vsyncadd %s148, 0
          %s155 = smul.addr %s152, 8
          %s156 = scalar_lea.hbm %s0, %s155
          %s157 = sshll.u32 %s156, 4
          %s158 = int_to_ptr.hbm [resolvable:$true] %s157
          %s159 = sshll.u32 %s151, 4
          %s160 = int_to_ptr.vmem [resolvable:$true] %s159
          %165 = dma.hbm_to_vmem [thread:$0]  %s158, 1024, %s160, %s148, 128, 128, 8
        $region28: #{tpu_custom_call.1} parent=23 // pred_fallthru
          _
      $region24: #{tpu_custom_call.1} parent=5 // pred_fallthru
        _
      %p166 = scmp.le.s32.totalorder 1, %s16
      %p167 = scmp.lt.s32.totalorder %s16, 3
      %p168 = pnand %p166, %p167
      %p169 = pneg %p168
      // Predicated region
      $region29: #{tpu_custom_call.1} parent=5 // pred_check
        _
      $region30: #{tpu_custom_call.1} parent=5 // pred_check_branch
        %171 = sbr.rel (%p168) target = $region32
      $region31: #{tpu_custom_call.1} parent=5 // pred_region
        %s172 = ssub.s32 %s16, 1
        %s173 = sand.u32 %s29, 1
        %s174 = scalar_lea.sflag [#allocation3], %s173
        %s175 = sand.u32 %s29, 1
        %s176 = smul.addr %s175, 64
        %s177 = scalar_lea.vmem [#allocation2], %s176
        // Predicated region
        $region33: #{tpu_custom_call.1} parent=31 // pred_check
          %p178 = pneg %p42
        $region34: #{tpu_custom_call.1} parent=31 // pred_check_branch
          %180 = sbr.rel (%p178) target = $region36
        $region35: #{tpu_custom_call.1} parent=31 // pred_region
          %182 = dma.done %s174, 1024
        $region36: #{tpu_custom_call.1} parent=31 // pred_fallthru
          _
        // Predicated region
        $region37: #{tpu_custom_call.1} parent=31 // pred_check
          %p183 = pneg %p63
        $region38: #{tpu_custom_call.1} parent=31 // pred_check_branch
          %185 = sbr.rel (%p183) target = $region40
        $region39: #{tpu_custom_call.1} parent=31 // pred_region
          %187 = dma.done [#allocation6], 16
        $region40: #{tpu_custom_call.1} parent=31 // pred_fallthru
          _
        %s188 = sand.u32 %s29, 1
        %s189 = scalar_lea.sflag [#allocation3], %s188
        %s190 = sand.u32 %s29, 1
        %s191 = smul.addr %s190, 64
        %s192 = scalar_lea.vmem [#allocation2], %s191
        %p193 = pneg %p42
        %p194 = pneg %p39
        %p195 = pneg %p63
        %p196 = pneg %p60
        %p197 = pneg %p84
        %p198 = pneg %p81
        %p199 = pneg %p110
        %p200 = pneg %p107
        %s201 = sand.u32 %s97, 1
        %s202 = scalar_lea.sflag [#allocation4], %s201
        %s203 = sand.u32 %s97, 1
        %s204 = smul.addr %s203, 64
        %s205 = scalar_lea.vmem [#allocation7], %s204
        %s206 = smul.u32 8, %s21
        %s207 = smul.u32 8, %s21
        %v208 = vld [vmem:[#allocation5] sm:$0x1]
        %v209 = vld [vmem:[%s2] sm:$0x1]
        %v210 = vld [vmem:[%s177] sm:$0xff]
        %v211 = vld [vmem:[%s177 + $0x8] sm:$0xff]
        %v212 = vld [vmem:[%s177 + $0x10] sm:$0xff]
        %v213 = vld [vmem:[%s177 + $0x18] sm:$0xff]
        %v214 = vld [vmem:[%s177 + $0x20] sm:$0xff]
        %v215 = vld [vmem:[%s177 + $0x28] sm:$0xff]
        %v216 = vld [vmem:[%s177 + $0x30] sm:$0xff]
        %v217 = vld [vmem:[%s177 + $0x38] sm:$0xff]
        %218 = vadd.xlane.f32.xlu0 %v210
        %v219 = vpop.xlane.xlu0 %218
        %220 = vadd.xlane.f32.xlu0 %v211
        %v221 = vpop.xlane.xlu0 %220
        %222 = vadd.xlane.f32.xlu0 %v212
        %v223 = vpop.xlane.xlu0 %222
        %224 = vadd.xlane.f32.xlu0 %v213
        %v225 = vpop.xlane.xlu0 %224
        %226 = vadd.xlane.f32.xlu0 %v214
        %v227 = vpop.xlane.xlu0 %226
        %228 = vadd.xlane.f32.xlu0 %v215
        %v229 = vpop.xlane.xlu0 %228
        %230 = vadd.xlane.f32.xlu0 %v216
        %v231 = vpop.xlane.xlu0 %230
        %232 = vadd.xlane.f32.xlu0 %v217
        %v233 = vpop.xlane.xlu0 %232
        %v234 = vrcp.pop 128.0
        %v235 = vmul.f32 128.0, %v234
        %v236 = vsub.f32 1.0, %v235
        %v237 = vmul.f32 %v234, %v236
        %v238 = vadd.f32 %v234, %v237
        %vm239 = vweird.f32 %v234
        %v240 = vsel %vm239, %v234, %v238
        %v241 = vmul.f32 %v219, %v240
        %v242 = vmul.f32 %v221, %v240
        %v243 = vmul.f32 %v223, %v240
        %v244 = vmul.f32 %v225, %v240
        %v245 = vmul.f32 %v227, %v240
        %v246 = vmul.f32 %v229, %v240
        %v247 = vmul.f32 %v231, %v240
        %v248 = vmul.f32 %v233, %v240
        %v249 = vsub.f32 %v210, %v241
        %v250 = vsub.f32 %v211, %v242
        %v251 = vsub.f32 %v212, %v243
        %v252 = vsub.f32 %v213, %v244
        %v253 = vsub.f32 %v214, %v245
        %v254 = vsub.f32 %v215, %v246
        %v255 = vsub.f32 %v216, %v247
        %v256 = vsub.f32 %v217, %v248
        %v257 = vmul.f32 %v249, %v249
        %v258 = vmul.f32 %v250, %v250
        %v259 = vmul.f32 %v251, %v251
        %v260 = vmul.f32 %v252, %v252
        %v261 = vmul.f32 %v253, %v253
        %v262 = vmul.f32 %v254, %v254
        %v263 = vmul.f32 %v255, %v255
        %v264 = vmul.f32 %v256, %v256
        %265 = vadd.xlane.f32.xlu0 %v257
        %v266 = vpop.xlane.xlu0 %265
        %267 = vadd.xlane.f32.xlu0 %v258
        %v268 = vpop.xlane.xlu0 %267
        %269 = vadd.xlane.f32.xlu0 %v259
        %v270 = vpop.xlane.xlu0 %269
        %271 = vadd.xlane.f32.xlu0 %v260
        %v272 = vpop.xlane.xlu0 %271
        %273 = vadd.xlane.f32.xlu0 %v261
        %v274 = vpop.xlane.xlu0 %273
        %275 = vadd.xlane.f32.xlu0 %v262
        %v276 = vpop.xlane.xlu0 %275
        %277 = vadd.xlane.f32.xlu0 %v263
        %v278 = vpop.xlane.xlu0 %277
        %279 = vadd.xlane.f32.xlu0 %v264
        %v280 = vpop.xlane.xlu0 %279
        %v281 = vmul.f32 %v266, %v240
        %v282 = vmul.f32 %v268, %v240
        %v283 = vmul.f32 %v270, %v240
        %v284 = vmul.f32 %v272, %v240
        %v285 = vmul.f32 %v274, %v240
        %v286 = vmul.f32 %v276, %v240
        %v287 = vmul.f32 %v278, %v240
        %v288 = vmul.f32 %v280, %v240
        %v289 = vadd.f32 %v281, 1e-05
        %v290 = vadd.f32 %v282, 1e-05
        %v291 = vadd.f32 %v283, 1e-05
        %v292 = vadd.f32 %v284, 1e-05
        %v293 = vadd.f32 %v285, 1e-05
        %v294 = vadd.f32 %v286, 1e-05
        %v295 = vadd.f32 %v287, 1e-05
        %v296 = vadd.f32 %v288, 1e-05
        %v297 = vrsqrt.pop %v289
        %v298 = vmul.f32 %v297, %v289
        %v299 = vmul.f32 %v298, %v297
        %v300 = vmul.f32 0.5, %v299
        %v301 = vsub.f32 1.5, %v300
        %v302 = vmul.f32 %v297, %v301
        %vm303 = vweird.f32 %v289
        %vm304 = vweird.f32 %v297
        %vm305 = vmor %vm303, %vm304
        %v306 = vsel %vm305, %v297, %v302
        %v307 = vrsqrt.pop %v290
        %v308 = vmul.f32 %v307, %v290
        %v309 = vmul.f32 %v308, %v307
        %v310 = vmul.f32 0.5, %v309
        %v311 = vsub.f32 1.5, %v310
        %v312 = vmul.f32 %v307, %v311
        %vm313 = vweird.f32 %v290
        %vm314 = vweird.f32 %v307
        %vm315 = vmor %vm313, %vm314
        %v316 = vsel %vm315, %v307, %v312
        %v317 = vrsqrt.pop %v291
        %v318 = vmul.f32 %v317, %v291
        %v319 = vmul.f32 %v318, %v317
        %v320 = vmul.f32 0.5, %v319
        %v321 = vsub.f32 1.5, %v320
        %v322 = vmul.f32 %v317, %v321
        %vm323 = vweird.f32 %v291
        %vm324 = vweird.f32 %v317
        %vm325 = vmor %vm323, %vm324
        %v326 = vsel %vm325, %v317, %v322
        %v327 = vrsqrt.pop %v292
        %v328 = vmul.f32 %v327, %v292
        %v329 = vmul.f32 %v328, %v327
        %v330 = vmul.f32 0.5, %v329
        %v331 = vsub.f32 1.5, %v330
        %v332 = vmul.f32 %v327, %v331
        %vm333 = vweird.f32 %v292
        %vm334 = vweird.f32 %v327
        %vm335 = vmor %vm333, %vm334
        %v336 = vsel %vm335, %v327, %v332
        %v337 = vrsqrt.pop %v293
        %v338 = vmul.f32 %v337, %v293
        %v339 = vmul.f32 %v338, %v337
        %v340 = vmul.f32 0.5, %v339
        %v341 = vsub.f32 1.5, %v340
        %v342 = vmul.f32 %v337, %v341
        %vm343 = vweird.f32 %v293
        %vm344 = vweird.f32 %v337
        %vm345 = vmor %vm343, %vm344
        %v346 = vsel %vm345, %v337, %v342
        %v347 = vrsqrt.pop %v294
        %v348 = vmul.f32 %v347, %v294
        %v349 = vmul.f32 %v348, %v347
        %v350 = vmul.f32 0.5, %v349
        %v351 = vsub.f32 1.5, %v350
        %v352 = vmul.f32 %v347, %v351
        %vm353 = vweird.f32 %v294
        %vm354 = vweird.f32 %v347
        %vm355 = vmor %vm353, %vm354
        %v356 = vsel %vm355, %v347, %v352
        %v357 = vrsqrt.pop %v295
        %v358 = vmul.f32 %v357, %v295
        %v359 = vmul.f32 %v358, %v357
        %v360 = vmul.f32 0.5, %v359
        %v361 = vsub.f32 1.5, %v360
        %v362 = vmul.f32 %v357, %v361
        %vm363 = vweird.f32 %v295
        %vm364 = vweird.f32 %v357
        %vm365 = vmor %vm363, %vm364
        %v366 = vsel %vm365, %v357, %v362
        %v367 = vrsqrt.pop %v296
        %v368 = vmul.f32 %v367, %v296
        %v369 = vmul.f32 %v368, %v367
        %v370 = vmul.f32 0.5, %v369
        %v371 = vsub.f32 1.5, %v370
        %v372 = vmul.f32 %v367, %v371
        %vm373 = vweird.f32 %v296
        %vm374 = vweird.f32 %v367
        %vm375 = vmor %vm373, %vm374
        %v376 = vsel %vm375, %v367, %v372
        %v377 = vmul.f32 %v249, %v306
        %v378 = vmul.f32 %v250, %v316
        %v379 = vmul.f32 %v251, %v326
        %v380 = vmul.f32 %v252, %v336
        %v381 = vmul.f32 %v253, %v346
        %v382 = vmul.f32 %v254, %v356
        %v383 = vmul.f32 %v255, %v366
        %v384 = vmul.f32 %v256, %v376
        %v386 = vperm.slane %v208, 0
        %v388 = vmul.f32 %v377, %v386
        %v389 = vmul.f32 %v378, %v386
        %v390 = vmul.f32 %v379, %v386
        %v391 = vmul.f32 %v380, %v386
        %v392 = vmul.f32 %v381, %v386
        %v393 = vmul.f32 %v382, %v386
        %v394 = vmul.f32 %v383, %v386
        %v395 = vmul.f32 %v384, %v386
        %v397 = vperm.slane %v209, 0
        %v399 = vadd.f32 %v388, %v397
        %v400 = vadd.f32 %v389, %v397
        %v401 = vadd.f32 %v390, %v397
        %v402 = vadd.f32 %v391, %v397
        %v403 = vadd.f32 %v392, %v397
        %v404 = vadd.f32 %v393, %v397
        %v405 = vadd.f32 %v394, %v397
        %v406 = vadd.f32 %v395, %v397
        %407 = vst [vmem:[%s205] sm:$0xff] %v399
        %408 = vst [vmem:[%s205 + $0x8] sm:$0xff] %v400
        %409 = vst [vmem:[%s205 + $0x10] sm:$0xff] %v401
        %410 = vst [vmem:[%s205 + $0x18] sm:$0xff] %v402
        %411 = vst [vmem:[%s205 + $0x20] sm:$0xff] %v403
        %412 = vst [vmem:[%s205 + $0x28] sm:$0xff] %v404
        %413 = vst [vmem:[%s205 + $0x30] sm:$0xff] %v405
        %414 = vst [vmem:[%s205 + $0x38] sm:$0xff] %v406
        %s415 = sand.u32 %s97, 1
        %s416 = scalar_lea.sflag [#allocation4], %s415
        %s417 = sand.u32 %s97, 1
        %s418 = smul.addr %s417, 64
        %s419 = scalar_lea.vmem [#allocation7], %s418
        // Predicated region
        $region41: #{tpu_custom_call.1} parent=31 // pred_check
          %p420 = pneg %p107
        $region42: #{tpu_custom_call.1} parent=31 // pred_check_branch
          %422 = sbr.rel (%p420) target = $region44
        $region43: #{tpu_custom_call.1} parent=31 // pred_region
          %s423 = smul.u32 8, %s21
          %425 = vsyncadd %s416, 0
          %s426 = smul.addr %s423, 8
          %s427 = scalar_lea.hbm %s3, %s426
          %s428 = sshll.u32 %s419, 4
          %s429 = int_to_ptr.vmem [resolvable:$true] %s428
          %s430 = sshll.u32 %s427, 4
          %s431 = int_to_ptr.hbm [resolvable:$true] %s430
          %436 = dma.vmem_to_hbm [thread:$0]  %s429, 1024, %s431, %s416, 128, 128, 8
        $region44: #{tpu_custom_call.1} parent=31 // pred_fallthru
          _
      $region32: #{tpu_custom_call.1} parent=5 // pred_fallthru
        _
      %p437 = scmp.le.s32.totalorder 2, %s16
      // Predicated region
      $region45: #{tpu_custom_call.1} parent=5 // pred_check
        %p438 = pneg %p437
      $region46: #{tpu_custom_call.1} parent=5 // pred_check_branch
        %440 = sbr.rel (%p438) target = $region48
      $region47: #{tpu_custom_call.1} parent=5 // pred_region
        %s441 = ssub.s32 %s16, 2
        // Predicated region
        $region49: #{tpu_custom_call.1} parent=47 // pred_check
          %p442 = pneg %p113
        $region50: #{tpu_custom_call.1} parent=47 // pred_check_branch
          %444 = sbr.rel (%p442) target = $region52
        $region51: #{tpu_custom_call.1} parent=47 // pred_region
          %s445 = sand.u32 %s98, 1
          %s446 = scalar_lea.sflag [#allocation4], %s445
          %s447 = sand.u32 %s98, 1
          %s448 = smul.addr %s447, 64
          %s449 = scalar_lea.vmem [#allocation7], %s448
          %451 = dma.done %s446, 1024
        $region52: #{tpu_custom_call.1} parent=47 // pred_fallthru
          _
      $region48: #{tpu_custom_call.1} parent=5 // pred_fallthru
        _
    $region6: #{tpu_custom_call.1} parent=1 // loop_footer
      %s20 = sadd.s32 1, %s16
    $region7: #{tpu_custom_call.1} parent=1 // loop_footer_branch
      %15 = sbr.rel target = $region3
    $region8: #{tpu_custom_call.1} parent=1 // loop_exit
      _
    %452 = vsyncpa [#allocation3], 1
    %s453 = scalar_lea.sflag [#allocation3], 1
    %454 = vsyncpa %s453, 1
    %455 = vsyncpa [#allocation6], 1
    %456 = vsyncpa [#allocation4], 1
    %s457 = scalar_lea.sflag [#allocation4], 1
    %458 = vsyncpa %s457, 1

</llo_original>
